<compile_context>
chip_gen: v6e
topology: v6e:2x2x1
jax: 0.10.0
libtpu: 0.0.40
codegen_flags: <defaults>
</compile_context>

<pallas_src>
import functools

import jax
import jax.numpy as jnp
import numpy as np
from jax.experimental import pallas as pl
from jax.experimental.pallas import tpu as pltpu

_LOG_2PI = float(np.log(2.0 * np.pi))

# 128-lane-aligned segment offsets inside the packed constants array (1, 640).
_B1_OFF = 0      # (1, 128)  fused layer-1 bias   [ba1 | bc1]
_B2_OFF = 128    # (1, 64)   fused layer-2 bias   [ba2 | bc2]
_B3_OFF = 256    # (1, 2A)   fused layer-3 bias   [ba3 | bc3]
_MAHA_OFF = 384  # (1, A)    -0.5 / action_var
_C0_OFF = 512    # (1, 1)    -0.5 * (A*log(2*pi) + log|Sigma|)
_CONSTS_WIDTH = 640


# --------------------------------------------------------------------------- #
# Kernel
# --------------------------------------------------------------------------- #
def _fused_actor_critic_kernel(state_ref, action_ref,
                               w1_ref, w2_ref, w3_ref, c_ref,
                               out_ref, *, eltwise_dtype):
    A = action_ref.shape[-1]

    # packed VMEM-resident constants (all slice starts are 128-lane aligned)
    b1 = c_ref[:, _B1_OFF:_B1_OFF + 128]            # (1, 128)
    b2 = c_ref[:, _B2_OFF:_B2_OFF + 64]             # (1, 64)
    b3 = c_ref[:, _B3_OFF:_B3_OFF + 2 * A]          # (1, 2A)
    w_maha = c_ref[:, _MAHA_OFF:_MAHA_OFF + A]      # (1, A)  = -0.5 / var
    c0 = c_ref[:, _C0_OFF:_C0_OFF + 1]              # (1, 1)

    # f32 -> bf16 cast done in-kernel (free VPU filler; halves state HBM read)
    x = state_ref[...].astype(w1_ref.dtype)         # (TB, S) bf16
    act = action_ref[...]                           # (TB, A) f32

    # fused layer 1: actor|critic side-by-side along lanes -> (TB, 128)
    pre1 = jnp.dot(x, w1_ref[...], preferred_element_type=jnp.float32) + b1
    h1 = jnp.tanh(pre1.astype(eltwise_dtype)).astype(w2_ref.dtype)
    # fused layer 2 (block-diagonal weights) -> (TB, 64)
    pre2 = jnp.dot(h1, w2_ref[...], preferred_element_type=jnp.float32) + b2
    h2 = jnp.tanh(pre2.astype(eltwise_dtype)).astype(w3_ref.dtype)
    # fused layer 3 -> (TB, 2A): first A cols = actor pre-tanh, last A = critic
    o3 = jnp.dot(h2, w3_ref[...], preferred_element_type=jnp.float32) + b3

    action_mean = jnp.tanh(o3[:, :A])               # (TB, A), f32 tanh
    value = o3[:, A:]                               # (TB, A), no tanh

    # diagonal-covariance MVN log_prob; -0.5 folded into w_maha and c0.
    diff = act - action_mean
    logp = jnp.sum(diff * diff * w_maha, axis=-1, keepdims=True) + c0   # (TB,1)

    # single packed store: [ value (A cols) | logp (1 col) ]
    out_ref[...] = jnp.concatenate([value, logp], axis=-1)


# --------------------------------------------------------------------------- #
# Parameter fusion (done once, outside the per-call path)
# --------------------------------------------------------------------------- #
def _round_up(n, m):
    return ((n + m - 1) // m) * m


def fuse_params(params, action_var, matmul_dtype=jnp.bfloat16):
    """Build fused lane-filling weights + packed constants once."""
    H1, H2 = 64, 32
    A = params["wa3"].shape[1]
    assert 2 * A <= 128, "packed-constants layout assumes action_dim <= 64"

    z2 = jnp.zeros((H1, H2), jnp.float32)
    z3 = jnp.zeros((H2, A), jnp.float32)

    w1 = jnp.concatenate([params["wa1"], params["wc1"]], axis=1)        # (S,128)
    w2 = jnp.concatenate(
        [jnp.concatenate([params["wa2"], z2], axis=1),
         jnp.concatenate([z2, params["wc2"]], axis=1)], axis=0)         # (128,64)
    w3 = jnp.concatenate(
        [jnp.concatenate([params["wa3"], z3], axis=1),
         jnp.concatenate([z3, params["wc3"]], axis=1)], axis=0)         # (64,2A)

    b1 = jnp.concatenate([params["ba1"], params["bc1"]], axis=1)        # (1,128)
    b2 = jnp.concatenate([params["ba2"], params["bc2"]], axis=1)        # (1,64)
    b3 = jnp.concatenate([params["ba3"], params["bc3"]], axis=1)        # (1,2A)

    action_var = action_var.astype(jnp.float32)
    log_det = jnp.sum(jnp.log(action_var))
    c0 = -0.5 * (A * _LOG_2PI + log_det)                                # scalar
    w_maha = -0.5 / action_var                                          # (A,)
    entropy = 0.5 * A * (1.0 + _LOG_2PI) + 0.5 * log_det                # scalar

    def seg(x):  # pad each piece to its own 128-lane aligned segment
        x = jnp.reshape(x, (1, -1)).astype(jnp.float32)
        return jnp.pad(x, ((0, 0), (0, 128 - x.shape[1])))

    consts = jnp.concatenate(
        [seg(b1), seg(b2), seg(b3), seg(w_maha), seg(jnp.reshape(c0, (1,)))],
        axis=1)                                                         # (1,640)
    assert consts.shape == (1, _CONSTS_WIDTH)

    return dict(w1=w1.astype(matmul_dtype),
                w2=w2.astype(matmul_dtype),
                w3=w3.astype(matmul_dtype),
                consts=consts,
                entropy=jnp.asarray(entropy, jnp.float32))


def _default_eltwise_dtype():
    """bf16 tanh on v6e/v7x (native bf16 EUP), f32 elsewhere (v5e etc.)."""
    try:
        kind = jax.devices()[0].device_kind.lower()
    except Exception:
        return jnp.float32
    if any(tag in kind for tag in ("v6", "v7", "7x")):
        return jnp.bfloat16
    return jnp.float32


# --------------------------------------------------------------------------- #
# Wrapper
# --------------------------------------------------------------------------- #
@functools.partial(jax.jit, static_argnames=("block_b", "eltwise_dtype"))
def actor_critic_evaluate(state, action, fused, block_b=4096,
                          eltwise_dtype=jnp.float32):
    """Pallas equivalent of ActorCritic.evaluate(state, action).

    Returns (action_logprobs (B,), state_value (B, action_dim), dist_entropy (B,)).
    """
    B, S = state.shape
    A = action.shape[1]

    # --- tile selection: multiple of 8, capped, >=2 grid steps for big B ---
    Bp = _round_up(B, 8)                       # sublane alignment only
    tb = _round_up(max(1, min(block_b, B)), 8)
    tb = min(tb, 8192)                         # VMEM safety cap (all gens)
    if Bp >= 2048:                             # give v7x's 2 TCs >=2 grid steps
        tb = min(tb, _round_up(pl.cdiv(Bp, 2), 8))
    grid = pl.cdiv(Bp, tb)                     # trailing partial block is masked

    state_p = state.astype(jnp.float32)        # stays f32; bf16 cast is in-kernel
    action_p = action.astype(jnp.float32)
    if Bp != B:                                # pad only the few tail rows
        state_p = jnp.pad(state_p, ((0, Bp - B), (0, 0)))
        action_p = jnp.pad(action_p, ((0, Bp - B), (0, 0)))

    w1, w2, w3, consts = fused["w1"], fused["w2"], fused["w3"], fused["consts"]

    row = lambda shape: pl.BlockSpec(shape, lambda i: (i, 0))
    res = lambda shape: pl.BlockSpec(shape, lambda i: (0, 0))   # VMEM-resident

    weight_bytes = sum(int(np.prod(v.shape)) * v.dtype.itemsize
                       for v in (w1, w2, w3, consts))
    cost = pl.CostEstimate(
        flops=2 * Bp * (S * 128 + 128 * 64 + 64 * 2 * A),
        transcendentals=Bp * (128 + 64 + A),
        bytes_accessed=Bp * (4 * S + 4 * A + 4 * (A + 1)) + weight_bytes,
    )

    kernel = functools.partial(_fused_actor_critic_kernel,
                               eltwise_dtype=eltwise_dtype)

    out = pl.pallas_call(
        kernel,
        out_shape=jax.ShapeDtypeStruct((Bp, A + 1), jnp.float32),
        grid=(grid,),
        in_specs=[
            row((tb, S)),            # state tile (f32)
            row((tb, A)),            # action tile (f32)
            res(w1.shape),           # fused weights (bf16)
            res(w2.shape),
            res(w3.shape),
            res(consts.shape),       # packed biases / maha weights / constant
        ],
        out_specs=row((tb, A + 1)),
        compiler_params=pltpu.CompilerParams(
            dimension_semantics=("parallel",),
            vmem_limit_bytes=32 * 1024 * 1024),
        cost_estimate=cost,
    )(state_p, action_p, w1, w2, w3, consts)

    value = out[:B, :A]
    logp = out[:B, A]
    ent = jnp.full((B,), fused["entropy"], jnp.float32)   # entropy is constant
    return logp, value, ent


# --------------------------------------------------------------------------- #
# Init + reference
# --------------------------------------------------------------------------- #
def init_params(key, state_dim, action_dim):
    """PyTorch-Linear-style init U(-1/sqrt(fan_in), 1/sqrt(fan_in)).
    Weights stored as (in_features, out_features)."""
    dims = [(state_dim, 64), (64, 32), (32, action_dim)]
    params = {}
    for branch in ("a", "c"):
        for i, (fi, fo) in enumerate(dims, start=1):
            key, kw, kb = jax.random.split(key, 3)
            bound = 1.0 / np.sqrt(fi)
            params[f"w{branch}{i}"] = jax.random.uniform(
                kw, (fi, fo), jnp.float32, -bound, bound)
            params[f"b{branch}{i}"] = jax.random.uniform(
                kb, (1, fo), jnp.float32, -bound, bound)
    return params


def _reference_evaluate(state, action, params, action_var,
                        matmul_dtype=jnp.bfloat16, eltwise_dtype=jnp.float32):
    """Pure-JAX reference mirroring the PyTorch module (same matmul / tanh precision)."""
    def lin(x, w, b):
        return jnp.dot(x.astype(matmul_dtype), w.astype(matmul_dtype),
                       preferred_element_type=jnp.float32) + b

    def hidden_act(x):
        return jnp.tanh(x.astype(eltwise_dtype)).astype(jnp.float32)

    h = hidden_act(lin(state, params["wa1"], params["ba1"]))
    h = hidden_act(lin(h, params["wa2"], params["ba2"]))
    mean = jnp.tanh(lin(h, params["wa3"], params["ba3"]))

    hc = hidden_act(lin(state, params["wc1"], params["bc1"]))
    hc = hidden_act(lin(hc, params["wc2"], params["bc2"]))
    value = lin(hc, params["wc3"], params["bc3"])

    A = action_var.shape[0]
    diff = action - mean
    log_det = jnp.sum(jnp.log(action_var))
    logp = -0.5 * (jnp.sum(diff * diff / action_var, axis=-1)
                   + A * _LOG_2PI + log_det)
    ent = jnp.full((state.shape[0],),
                   0.5 * A * (1.0 + _LOG_2PI) + 0.5 * log_det)
    return logp, value, ent


# --------------------------------------------------------------------------- #
if __name__ == "__main__":
    # TODO(synk): ActorCritic.act() (MultivariateNormal sampling) is not ported;
    # only the evaluate() forward path is implemented here.
    state_dim, action_dim, action_std = 16, 8, 0.5
    batch = 8

    key = jax.random.PRNGKey(0)
    k_params, k_state, k_action = jax.random.split(key, 3)

    params = init_params(k_params, state_dim, action_dim)
    action_var = jnp.full((action_dim,), action_std * action_std, jnp.float32)

    state = jax.random.normal(k_state, (batch, state_dim), jnp.float32)
    action = jax.random.normal(k_action, (batch, action_dim), jnp.float32)

    eltwise_dtype = _default_eltwise_dtype()           # bf16 on v6e/v7x, f32 on v5e
    fused = fuse_params(params, action_var)            # one-time weight fusion

    logp, value, ent = actor_critic_evaluate(state, action, fused,
                                             eltwise_dtype=eltwise_dtype)
    jax.block_until_ready((logp, value, ent))

    # sanity-check against a pure-JAX reference with matching precision choices
    ref_logp, ref_value, ref_ent = _reference_evaluate(
        state, action, params, action_var, eltwise_dtype=eltwise_dtype)
    np.testing.assert_allclose(np.asarray(value), np.asarray(ref_value),
                               rtol=1e-2, atol=1e-2)
    np.testing.assert_allclose(np.asarray(logp), np.asarray(ref_logp),
                               rtol=1e-2, atol=1e-2)
    np.testing.assert_allclose(np.asarray(ent), np.asarray(ref_ent),
                               rtol=1e-5, atol=1e-5)

    print("KERNEL_OK")
</pallas_src>

<mosaic_0001>
module attributes {stable_mosaic.version = 11 : i64} {
  func.func @_fused_actor_critic_kernel(%arg0: i32, %arg1: memref<8x16xf32, #tpu.memory_space<vmem>>, %arg2: memref<8x8xf32, #tpu.memory_space<vmem>>, %arg3: memref<16x128xbf16, #tpu.memory_space<vmem>>, %arg4: memref<128x64xbf16, #tpu.memory_space<vmem>>, %arg5: memref<64x16xbf16, #tpu.memory_space<vmem>>, %arg6: memref<1x640xf32, #tpu.memory_space<vmem>>, %arg7: memref<8x9xf32, #tpu.memory_space<vmem>>) attributes {dimension_semantics = [#tpu.dimension_semantics<parallel>], iteration_bounds = array<i64: 1>, scalar_prefetch = 0 : i64, scratch_operands = 0 : i64, tpu.core_type = #tpu.core_type<tc>, window_params = [{transform_indices = @transform_0, window_bounds = array<i64: 8, 16>}, {transform_indices = @transform_1, window_bounds = array<i64: 8, 8>}, {pipeline_mode = #tpu.pipeline_mode<synchronous>, transform_indices = @transform_2, window_bounds = array<i64: 16, 128>}, {pipeline_mode = #tpu.pipeline_mode<synchronous>, transform_indices = @transform_3, window_bounds = array<i64: 128, 64>}, {pipeline_mode = #tpu.pipeline_mode<synchronous>, transform_indices = @transform_4, window_bounds = array<i64: 64, 16>}, {pipeline_mode = #tpu.pipeline_mode<synchronous>, transform_indices = @transform_5, window_bounds = array<i64: 1, 640>}, {transform_indices = @transform_6, window_bounds = array<i64: 8, 9>}]} {
    %c0 = arith.constant 0 : index
    %c0_0 = arith.constant 0 : index
    %0 = vector.load %arg6[%c0, %c0_0] : memref<1x640xf32, #tpu.memory_space<vmem>>, vector<1x128xf32>
    %c0_1 = arith.constant 0 : index
    %c128 = arith.constant 128 : index
    %1 = vector.load %arg6[%c0_1, %c128] : memref<1x640xf32, #tpu.memory_space<vmem>>, vector<1x64xf32>
    %c0_2 = arith.constant 0 : index
    %c256 = arith.constant 256 : index
    %2 = vector.load %arg6[%c0_2, %c256] : memref<1x640xf32, #tpu.memory_space<vmem>>, vector<1x16xf32>
    %c0_3 = arith.constant 0 : index
    %c384 = arith.constant 384 : index
    %3 = vector.load %arg6[%c0_3, %c384] : memref<1x640xf32, #tpu.memory_space<vmem>>, vector<1x8xf32>
    %c0_4 = arith.constant 0 : index
    %c512 = arith.constant 512 : index
    %4 = vector.load %arg6[%c0_4, %c512] : memref<1x640xf32, #tpu.memory_space<vmem>>, vector<1x1xf32>
    %c0_5 = arith.constant 0 : index
    %c0_6 = arith.constant 0 : index
    %5 = vector.load %arg1[%c0_5, %c0_6] : memref<8x16xf32, #tpu.memory_space<vmem>>, vector<8x16xf32>
    %6 = arith.truncf %5 : vector<8x16xf32> to vector<8x16xbf16>
    %c0_7 = arith.constant 0 : index
    %c0_8 = arith.constant 0 : index
    %7 = vector.load %arg2[%c0_7, %c0_8] : memref<8x8xf32, #tpu.memory_space<vmem>>, vector<8x8xf32>
    %c0_9 = arith.constant 0 : index
    %c0_10 = arith.constant 0 : index
    %8 = vector.load %arg3[%c0_9, %c0_10] : memref<16x128xbf16, #tpu.memory_space<vmem>>, vector<16x128xbf16>
    %cst = arith.constant dense<0.000000e+00> : vector<8x128xf32>
    %9 = tpu.matmul %6, %8, %cst {dimension_numbers = #tpu.dot_dimension_numbers<[1], [0], [0], [1], [0, 0, 1, 1], [], []>} : vector<8x16xbf16>, vector<16x128xbf16>, vector<8x128xf32> -> vector<8x128xf32>
    %10 = vector.broadcast %0 : vector<1x128xf32> to vector<8x128xf32>
    %11 = arith.addf %9, %10 : vector<8x128xf32>
    %12 = math.tanh %11 : vector<8x128xf32>
    %13 = arith.truncf %12 : vector<8x128xf32> to vector<8x128xbf16>
    %c0_11 = arith.constant 0 : index
    %c0_12 = arith.constant 0 : index
    %14 = vector.load %arg4[%c0_11, %c0_12] : memref<128x64xbf16, #tpu.memory_space<vmem>>, vector<128x64xbf16>
    %cst_13 = arith.constant dense<0.000000e+00> : vector<8x64xf32>
    %15 = tpu.matmul %13, %14, %cst_13 {dimension_numbers = #tpu.dot_dimension_numbers<[1], [0], [0], [1], [0, 0, 1, 1], [], []>} : vector<8x128xbf16>, vector<128x64xbf16>, vector<8x64xf32> -> vector<8x64xf32>
    %16 = vector.broadcast %1 : vector<1x64xf32> to vector<8x64xf32>
    %17 = arith.addf %15, %16 : vector<8x64xf32>
    %18 = math.tanh %17 : vector<8x64xf32>
    %19 = arith.truncf %18 : vector<8x64xf32> to vector<8x64xbf16>
    %c0_14 = arith.constant 0 : index
    %c0_15 = arith.constant 0 : index
    %20 = vector.load %arg5[%c0_14, %c0_15] : memref<64x16xbf16, #tpu.memory_space<vmem>>, vector<64x16xbf16>
    %cst_16 = arith.constant dense<0.000000e+00> : vector<8x16xf32>
    %21 = tpu.matmul %19, %20, %cst_16 {dimension_numbers = #tpu.dot_dimension_numbers<[1], [0], [0], [1], [0, 0, 1, 1], [], []>} : vector<8x64xbf16>, vector<64x16xbf16>, vector<8x16xf32> -> vector<8x16xf32>
    %22 = vector.broadcast %2 : vector<1x16xf32> to vector<8x16xf32>
    %23 = arith.addf %21, %22 : vector<8x16xf32>
    %24 = vector.extract_strided_slice %23 {offsets = [0, 0], sizes = [8, 8], strides = [1, 1]} : vector<8x16xf32> to vector<8x8xf32>
    %25 = math.tanh %24 : vector<8x8xf32>
    %26 = vector.extract_strided_slice %23 {offsets = [0, 8], sizes = [8, 8], strides = [1, 1]} : vector<8x16xf32> to vector<8x8xf32>
    %27 = arith.subf %7, %25 : vector<8x8xf32>
    %28 = arith.mulf %27, %27 : vector<8x8xf32>
    %29 = vector.broadcast %3 : vector<1x8xf32> to vector<8x8xf32>
    %30 = arith.mulf %28, %29 : vector<8x8xf32>
    %cst_17 = arith.constant dense<0.000000e+00> : vector<8xf32>
    %31 = vector.multi_reduction <add>, %30, %cst_17 [1] : vector<8x8xf32> to vector<8xf32>
    %32 = vector.shape_cast %31 : vector<8xf32> to vector<8x1xf32>
    %33 = vector.broadcast %4 : vector<1x1xf32> to vector<8x1xf32>
    %34 = arith.addf %32, %33 : vector<8x1xf32>
    %35 = tpu.concatenate %26, %34 in 1 : vector<8x8xf32>, vector<8x1xf32> -> vector<8x9xf32>
    %c0_18 = arith.constant 0 : index
    %c0_19 = arith.constant 0 : index
    %36 = vector.load %arg7[%c0_18, %c0_19] : memref<8x9xf32, #tpu.memory_space<vmem>>, vector<8x9xf32>
    tpu.vector_store %arg7[%c0_18, %c0_19], %35 {strides = array<i32>} : memref<8x9xf32, #tpu.memory_space<vmem>>, vector<8x9xf32>,
    return
  }
  func.func @transform_0(%arg0: i32) -> (i32, i32) {
    %c0_i32 = arith.constant 0 : i32
    %c0_i32_0 = arith.constant 0 : i32
    return %arg0, %c0_i32 : i32, i32
  }
  func.func @transform_1(%arg0: i32) -> (i32, i32) {
    %c0_i32 = arith.constant 0 : i32
    %c0_i32_0 = arith.constant 0 : i32
    return %arg0, %c0_i32 : i32, i32
  }
  func.func @transform_2(%arg0: i32) -> (i32, i32) {
    %c0_i32 = arith.constant 0 : i32
    %c0_i32_0 = arith.constant 0 : i32
    %c0_i32_1 = arith.constant 0 : i32
    return %c0_i32, %c0_i32_0 : i32, i32
  }
  func.func @transform_3(%arg0: i32) -> (i32, i32) {
    %c0_i32 = arith.constant 0 : i32
    %c0_i32_0 = arith.constant 0 : i32
    %c0_i32_1 = arith.constant 0 : i32
    return %c0_i32, %c0_i32_0 : i32, i32
  }
  func.func @transform_4(%arg0: i32) -> (i32, i32) {
    %c0_i32 = arith.constant 0 : i32
    %c0_i32_0 = arith.constant 0 : i32
    %c0_i32_1 = arith.constant 0 : i32
    return %c0_i32, %c0_i32_0 : i32, i32
  }
  func.func @transform_5(%arg0: i32) -> (i32, i32) {
    %c0_i32 = arith.constant 0 : i32
    %c0_i32_0 = arith.constant 0 : i32
    %c0_i32_1 = arith.constant 0 : i32
    return %c0_i32, %c0_i32_0 : i32, i32
  }
  func.func @transform_6(%arg0: i32) -> (i32, i32) {
    %c0_i32 = arith.constant 0 : i32
    %c0_i32_0 = arith.constant 0 : i32
    return %arg0, %c0_i32 : i32, i32
  }
}

</mosaic_0001>

<llo_original>
// kernel: actor_critic_evaluate.1
$region0: #{actor_critic_evaluate.1}
  #allocation0 [shape = 'u32[]', space=smem, size = 0x4, offset = 0x4, fixed_abs, tag = 'smem constant byte address 0x4 - core index']
  #allocation1 [shape = 'u32[144,128]{1,0:T(1,128)}', space=vmem, size = 0x12000, scoped, tag = 'internal scratch']
  %s0 = inlined_call_operand.vmem [shape: f32[8,16], index: 0, kind: input, shape index: {}]
  %s1 = inlined_call_operand.vmem [shape: f32[8,8], index: 1, kind: input, shape index: {}]
  %s2 = inlined_call_operand.vmem [shape: bf16[16,128], index: 2, kind: input, shape index: {}]
  %s3 = inlined_call_operand.vmem [shape: bf16[128,64], index: 3, kind: input, shape index: {}]
  %s4 = inlined_call_operand.vmem [shape: bf16[64,16], index: 4, kind: input, shape index: {}]
  %s5 = inlined_call_operand.vmem [shape: f32[1,640], index: 5, kind: input, shape index: {}]
  %s6 = inlined_call_operand.vmem [shape: f32[8,9], index: 6, kind: output, shape index: {}]
  %s7 = sld [smem:[#allocation0]]
  $region34: #{actor_critic_evaluate.1} parent=0
    _
  %s9 = ssub.s32 1, %s7
  %s10 = scalar_select 0, %s9, %s7
  // Predicated region
  $region2: #{actor_critic_evaluate.1} parent=0 // pred_check
    _
  $region3: #{actor_critic_evaluate.1} parent=0 // pred_check_branch
    %12 = sbr.rel (0) target = $region5
  $region4: #{actor_critic_evaluate.1} parent=0 // pred_region
    _
  $region5: #{actor_critic_evaluate.1} parent=0 // pred_fallthru
    _
  // Predicated region
  $region6: #{actor_critic_evaluate.1} parent=0 // pred_check
    _
  $region7: #{actor_critic_evaluate.1} parent=0 // pred_check_branch
    %14 = sbr.rel (0) target = $region9
  $region8: #{actor_critic_evaluate.1} parent=0 // pred_region
    _
  $region9: #{actor_critic_evaluate.1} parent=0 // pred_fallthru
    _
  // Predicated region
  $region10: #{actor_critic_evaluate.1} parent=0 // pred_check
    _
  $region11: #{actor_critic_evaluate.1} parent=0 // pred_check_branch
    %16 = sbr.rel (0) target = $region13
  $region12: #{actor_critic_evaluate.1} parent=0 // pred_region
    _
  $region13: #{actor_critic_evaluate.1} parent=0 // pred_fallthru
    _
  // Predicated region
  $region14: #{actor_critic_evaluate.1} parent=0 // pred_check
    _
  $region15: #{actor_critic_evaluate.1} parent=0 // pred_check_branch
    %18 = sbr.rel (0) target = $region17
  $region16: #{actor_critic_evaluate.1} parent=0 // pred_region
    _
  $region17: #{actor_critic_evaluate.1} parent=0 // pred_fallthru
    _
  // Predicated region
  $region18: #{actor_critic_evaluate.1} parent=0 // pred_check
    _
  $region19: #{actor_critic_evaluate.1} parent=0 // pred_check_branch
    %20 = sbr.rel (0) target = $region21
  $region20: #{actor_critic_evaluate.1} parent=0 // pred_region
    _
  $region21: #{actor_critic_evaluate.1} parent=0 // pred_fallthru
    _
  // Predicated region
  $region22: #{actor_critic_evaluate.1} parent=0 // pred_check
    _
  $region23: #{actor_critic_evaluate.1} parent=0 // pred_check_branch
    %22 = sbr.rel (0) target = $region25
  $region24: #{actor_critic_evaluate.1} parent=0 // pred_region
    _
  $region25: #{actor_critic_evaluate.1} parent=0 // pred_fallthru
    _
  %v24 = vld [vmem:[%s5] sm:$0x1]
  %v25 = vld [vmem:[%s5 + $0x1] sm:$0x1]
  %v26 = vld [vmem:[%s5 + $0x2] sm:$0x1]
  %v27 = vld [vmem:[%s5 + $0x3] sm:$0x1]
  %v28 = vld [vmem:[%s5 + $0x4] sm:$0x1]
  %v29 = vld [vmem:[%s0] sm:$0xff]
  %v30 = vpack.c.bf16 %v29, %v29
  %v31 = vld [vmem:[%s1] sm:$0xff]
  %v32 = vld [vmem:[%s2] sm:$0xf]
  %v33 = vld [vmem:[%s2 + $0x4] sm:$0xf]
  %v35 = vlaneseq
  %v36 = vshrl.u32 %v35, 7
  %v37 = vsub.s32 0, %v36
  %v38 = vrot.slane %v24, %v37
  %v42 = vunpack.c.l.b16 %v32
  %v43 = vunpack.c.l.b16 %v33
  %v44 = vpack.c.b16 %v43, %v42
  %vm46 = vcmask 130048
  %v48 = vsel %vm46, %v30, 0
  %50 = vmatprep.subr.bf16.mxu0 0
  %51 = vmatpush1.bf16.msra.mxu0 0
  %52 = vmatprep.subr.bf16.mxu0 0
  %53 = vmatpush1.bf16.msra.mxu0 0
  %54 = vmatprep.subr.bf16.mxu0 0
  %55 = vmatpush1.bf16.msra.mxu0 0
  %56 = vmatprep.subr.bf16.mxu0 0
  %57 = vmatpush1.bf16.msra.mxu0 0
  %58 = vmatprep.subr.bf16.mxu0 0
  %59 = vmatpush1.bf16.msra.mxu0 0
  %60 = vmatprep.subr.bf16.mxu0 0
  %61 = vmatpush1.bf16.msra.mxu0 0
  %62 = vmatprep.subr.bf16.mxu0 0
  %63 = vmatpush1.bf16.msra.mxu0 0
  %64 = vmatprep.subr.bf16.mxu0 0
  %65 = vmatpush1.bf16.msra.mxu0 %v44
  %66 = vmatprep.subr.bf16.mxu0 0
  %67 = vmatpush2.bf16.msra.mxu0 0
  %68 = vmatprep.subr.bf16.mxu0 0
  %69 = vmatpush2.bf16.msra.mxu0 0
  %70 = vmatprep.subr.bf16.mxu0 0
  %71 = vmatpush2.bf16.msra.mxu0 0
  %72 = vmatprep.subr.bf16.mxu0 0
  %73 = vmatpush2.bf16.msra.mxu0 0
  %74 = vmatprep.subr.bf16.mxu0 0
  %75 = vmatpush2.bf16.msra.mxu0 0
  %76 = vmatprep.subr.bf16.mxu0 0
  %77 = vmatpush2.bf16.msra.mxu0 0
  %78 = vmatprep.subr.bf16.mxu0 0
  %79 = vmatpush2.bf16.msra.mxu0 0
  %80 = vmatprep.subr.bf16.mxu0 0
  %81 = vmatpush2.bf16.msra.mxu0 0
  %82 = vmatprep.mubr.bf16.mxu0 0
  %83 = vmatmul.mubr.bf16.gmra.mxu0 %v48
  %v84 = vpop.f32.mrf.mxu0
  %v85 = vadd.f32 %v38, %v84
  %v86 = vpop.f32.mrf.mxu0
  %v87 = vpop.f32.mrf.mxu0
  %v88 = vpop.f32.mrf.mxu0
  %89 = vdwg.mxu0
  %v90 = vtanh.pop %v85
  %v91 = vpack.c.bf16 %v90, %v90
  %v92 = vld [vmem:[%s3] sm:$0xf]
  %v93 = vld [vmem:[%s3 + $0x4] sm:$0xf]
  %v94 = vld [vmem:[%s3 + $0x8] sm:$0xf]
  %v95 = vld [vmem:[%s3 + $0xc] sm:$0xf]
  %v96 = vld [vmem:[%s3 + $0x10] sm:$0xf]
  %v97 = vld [vmem:[%s3 + $0x14] sm:$0xf]
  %v98 = vld [vmem:[%s3 + $0x18] sm:$0xf]
  %v99 = vld [vmem:[%s3 + $0x1c] sm:$0xf]
  %v100 = vld [vmem:[%s3 + $0x20] sm:$0xf]
  %v101 = vld [vmem:[%s3 + $0x24] sm:$0xf]
  %v102 = vld [vmem:[%s3 + $0x28] sm:$0xf]
  %v103 = vld [vmem:[%s3 + $0x2c] sm:$0xf]
  %v104 = vld [vmem:[%s3 + $0x30] sm:$0xf]
  %v105 = vld [vmem:[%s3 + $0x34] sm:$0xf]
  %v106 = vld [vmem:[%s3 + $0x38] sm:$0xf]
  %v107 = vld [vmem:[%s3 + $0x3c] sm:$0xf]
  %v109 = vlaneseq
  %v110 = vshrl.u32 %v109, 7
  %v111 = vsub.s32 0, %v110
  %v112 = vrot.slane %v25, %v111
  %v130 = vunpack.c.l.b16 %v92
  %v131 = vunpack.c.l.b16 %v93
  %v132 = vunpack.c.l.b16 %v94
  %v133 = vunpack.c.l.b16 %v95
  %v134 = vunpack.c.l.b16 %v96
  %v135 = vunpack.c.l.b16 %v97
  %v136 = vunpack.c.l.b16 %v98
  %v137 = vunpack.c.l.b16 %v99
  %v138 = vunpack.c.l.b16 %v100
  %v139 = vunpack.c.l.b16 %v101
  %v140 = vunpack.c.l.b16 %v102
  %v141 = vunpack.c.l.b16 %v103
  %v142 = vunpack.c.l.b16 %v104
  %v143 = vunpack.c.l.b16 %v105
  %v144 = vunpack.c.l.b16 %v106
  %v145 = vunpack.c.l.b16 %v107
  %v146 = vpack.c.b16 %v131, %v130
  %v147 = vpack.c.b16 %v133, %v132
  %v148 = vpack.c.b16 %v135, %v134
  %v149 = vpack.c.b16 %v137, %v136
  %v150 = vpack.c.b16 %v139, %v138
  %v151 = vpack.c.b16 %v141, %v140
  %v152 = vpack.c.b16 %v143, %v142
  %v153 = vpack.c.b16 %v145, %v144
  %162 = vmatprep.subr.bf16.mxu0 0
  %163 = vmatpush1.bf16.msra.mxu0 %v153
  %164 = vmatprep.subr.bf16.mxu0 0
  %165 = vmatpush1.bf16.msra.mxu0 %v152
  %166 = vmatprep.subr.bf16.mxu0 0
  %167 = vmatpush1.bf16.msra.mxu0 %v151
  %168 = vmatprep.subr.bf16.mxu0 0
  %169 = vmatpush1.bf16.msra.mxu0 %v150
  %170 = vmatprep.subr.bf16.mxu0 0
  %171 = vmatpush1.bf16.msra.mxu0 %v149
  %172 = vmatprep.subr.bf16.mxu0 0
  %173 = vmatpush1.bf16.msra.mxu0 %v148
  %174 = vmatprep.subr.bf16.mxu0 0
  %175 = vmatpush1.bf16.msra.mxu0 %v147
  %176 = vmatprep.subr.bf16.mxu0 0
  %177 = vmatpush1.bf16.msra.mxu0 %v146
  %178 = vmatprep.subr.bf16.mxu0 0
  %179 = vmatpush2.bf16.msra.mxu0 0
  %180 = vmatprep.subr.bf16.mxu0 0
  %181 = vmatpush2.bf16.msra.mxu0 0
  %182 = vmatprep.subr.bf16.mxu0 0
  %183 = vmatpush2.bf16.msra.mxu0 0
  %184 = vmatprep.subr.bf16.mxu0 0
  %185 = vmatpush2.bf16.msra.mxu0 0
  %186 = vmatprep.subr.bf16.mxu0 0
  %187 = vmatpush2.bf16.msra.mxu0 0
  %188 = vmatprep.subr.bf16.mxu0 0
  %189 = vmatpush2.bf16.msra.mxu0 0
  %190 = vmatprep.subr.bf16.mxu0 0
  %191 = vmatpush2.bf16.msra.mxu0 0
  %192 = vmatprep.subr.bf16.mxu0 0
  %193 = vmatpush2.bf16.msra.mxu0 0
  %194 = vmatprep.mubr.bf16.mxu0 0
  %195 = vmatmul.mubr.bf16.gmra.mxu0 %v91
  %v196 = vpop.f32.mrf.mxu0
  %v197 = vadd.f32 %v112, %v196
  %v198 = vpop.f32.mrf.mxu0
  %v199 = vpop.f32.mrf.mxu0
  %v200 = vpop.f32.mrf.mxu0
  %201 = vdwg.mxu0
  %v202 = vtanh.pop %v197
  %v203 = vpack.c.bf16 %v202, %v202
  %v204 = vld [vmem:[%s4] sm:$0xf]
  %v205 = vld [vmem:[%s4 + $0x4] sm:$0xf]
  %v206 = vld [vmem:[%s4 + $0x8] sm:$0xf]
  %v207 = vld [vmem:[%s4 + $0xc] sm:$0xf]
  %v208 = vld [vmem:[%s4 + $0x10] sm:$0xf]
  %v209 = vld [vmem:[%s4 + $0x14] sm:$0xf]
  %v210 = vld [vmem:[%s4 + $0x18] sm:$0xf]
  %v211 = vld [vmem:[%s4 + $0x1c] sm:$0xf]
  %v213 = vlaneseq
  %v214 = vshrl.u32 %v213, 7
  %v215 = vsub.s32 0, %v214
  %v216 = vrot.slane %v26, %v215
  %v226 = vunpack.c.l.b16 %v204
  %v227 = vunpack.c.l.b16 %v205
  %v228 = vunpack.c.l.b16 %v206
  %v229 = vunpack.c.l.b16 %v207
  %v230 = vunpack.c.l.b16 %v208
  %v231 = vunpack.c.l.b16 %v209
  %v232 = vunpack.c.l.b16 %v210
  %v233 = vunpack.c.l.b16 %v211
  %v234 = vpack.c.b16 %v227, %v226
  %v235 = vpack.c.b16 %v229, %v228
  %v236 = vpack.c.b16 %v231, %v230
  %v237 = vpack.c.b16 %v233, %v232
  %vm242 = vcmask 523264
  %v244 = vsel %vm242, %v203, 0
  %246 = vmatprep.subr.bf16.mxu0 0
  %247 = vmatpush1.bf16.msra.mxu0 0
  %248 = vmatprep.subr.bf16.mxu0 0
  %249 = vmatpush1.bf16.msra.mxu0 0
  %250 = vmatprep.subr.bf16.mxu0 0
  %251 = vmatpush1.bf16.msra.mxu0 0
  %252 = vmatprep.subr.bf16.mxu0 0
  %253 = vmatpush1.bf16.msra.mxu0 0
  %254 = vmatprep.subr.bf16.mxu0 0
  %255 = vmatpush1.bf16.msra.mxu0 %v237
  %256 = vmatprep.subr.bf16.mxu0 0
  %257 = vmatpush1.bf16.msra.mxu0 %v236
  %258 = vmatprep.subr.bf16.mxu0 0
  %259 = vmatpush1.bf16.msra.mxu0 %v235
  %260 = vmatprep.subr.bf16.mxu0 0
  %261 = vmatpush1.bf16.msra.mxu0 %v234
  %262 = vmatprep.subr.bf16.mxu0 0
  %263 = vmatpush2.bf16.msra.mxu0 0
  %264 = vmatprep.subr.bf16.mxu0 0
  %265 = vmatpush2.bf16.msra.mxu0 0
  %266 = vmatprep.subr.bf16.mxu0 0
  %267 = vmatpush2.bf16.msra.mxu0 0
  %268 = vmatprep.subr.bf16.mxu0 0
  %269 = vmatpush2.bf16.msra.mxu0 0
  %270 = vmatprep.subr.bf16.mxu0 0
  %271 = vmatpush2.bf16.msra.mxu0 0
  %272 = vmatprep.subr.bf16.mxu0 0
  %273 = vmatpush2.bf16.msra.mxu0 0
  %274 = vmatprep.subr.bf16.mxu0 0
  %275 = vmatpush2.bf16.msra.mxu0 0
  %276 = vmatprep.subr.bf16.mxu0 0
  %277 = vmatpush2.bf16.msra.mxu0 0
  %278 = vmatprep.mubr.bf16.mxu0 0
  %279 = vmatmul.mubr.bf16.gmra.mxu0 %v244
  %v280 = vpop.f32.mrf.mxu0
  %v281 = vadd.f32 %v216, %v280
  %v282 = vpop.f32.mrf.mxu0
  %v283 = vpop.f32.mrf.mxu0
  %v284 = vpop.f32.mrf.mxu0
  %285 = vdwg.mxu0
  %v286 = vtanh.pop %v281
  %v287 = vsub.f32 %v31, %v286
  %v288 = vmul.f32 %v287, %v287
  %v290 = vlaneseq
  %v291 = vshrl.u32 %v290, 7
  %v292 = vsub.s32 0, %v291
  %v293 = vrot.slane %v27, %v292
  %v295 = vmul.f32 %v288, %v293
  %vm296 = vcmask 64512
  %v297 = vsel %vm296, %v295, 0.0
  %298 = vadd.xlane.f32.xlu0 %v297
  %v299 = vpop.xlane.xlu0 %298
  %v301 = vlaneseq
  %v302 = vshrl.u32 %v301, 7
  %v303 = vsub.s32 0, %v302
  %v304 = vrot.slane %v28, %v303
  %v306 = vadd.f32 %v299, %v304
  %308 = vrot.lane.b32.xlu0 %v281, 120
  %v309 = vpop.permute.xlu0 %308
  %312 = vrot.lane.b32.xlu0 %v306, 8
  %v313 = vpop.permute.xlu0 %312
  %v315 = vsel %vm296, %v309, %v313
  %vm316 = vcmask 72704
  %317 = vst.msk [vmem:[%s6] sm:$0xff] %vm316, %v315
  // Predicated region
  $region26: #{actor_critic_evaluate.1} parent=0 // pred_check
    _
  $region27: #{actor_critic_evaluate.1} parent=0 // pred_check_branch
    %319 = sbr.rel (0) target = $region29
  $region28: #{actor_critic_evaluate.1} parent=0 // pred_region
    _
  $region29: #{actor_critic_evaluate.1} parent=0 // pred_fallthru
    _
  // Predicated region
  $region30: #{actor_critic_evaluate.1} parent=0 // pred_check
    _
  $region31: #{actor_critic_evaluate.1} parent=0 // pred_check_branch
    %321 = sbr.rel (0) target = $region33
  $region32: #{actor_critic_evaluate.1} parent=0 // pred_region
    _
  $region33: #{actor_critic_evaluate.1} parent=0 // pred_fallthru
    _

</llo_original>
